<compile_context>
chip_gen: v7x
topology: tpu7x:2x2x1
jax: 0.10.0
libtpu: 0.0.40
codegen_flags: <defaults>
</compile_context>

<pallas_src>
import functools

import jax
import jax.numpy as jnp
from jax import lax
from jax.experimental import pallas as pl
from jax.experimental.pallas import tpu as pltpu


def _lse_kernel(pred_ref, lse_ref, m_ref, l_ref, *, num_cols):
    """Streaming logsumexp over class tiles.

    pred_ref: (TM, TC) logits (native dtype)          VMEM
    lse_ref:  (TM, 1)  f32 per-row logsumexp (written at last class tile)
    m_ref/l_ref: (TM, 1) f32 running max / running sum-exp scratch
    """
    j = pl.program_id(1)
    nj = pl.num_programs(1)
    tm, tc = pred_ref.shape

    @pl.when(j == 0)
    def _():
        m_ref[...] = jnp.full_like(m_ref, -jnp.inf)
        l_ref[...] = jnp.zeros_like(l_ref)

    logits = pred_ref[...].astype(jnp.float32)  # (TM, TC)

    def _update(x):
        m_old = m_ref[...]
        m_new = jnp.maximum(m_old, jnp.max(x, axis=-1, keepdims=True))
        alpha = jnp.exp(m_old - m_new)
        l_ref[...] = alpha * l_ref[...] + jnp.sum(jnp.exp(x - m_new),
                                                  axis=-1, keepdims=True)
        m_ref[...] = m_new

    if num_cols % tc == 0:
        # Tile-aligned class dim: never pay a mask.
        _update(logits)
    else:
        # Ragged class dim: mask to -inf ONLY on the last class tile.
        @pl.when(j < nj - 1)
        def _():
            _update(logits)

        @pl.when(j == nj - 1)
        def _():
            rem = num_cols - j * tc                                  # valid cols
            col = lax.broadcasted_iota(jnp.int32, (tm, tc), 1)       # local iota
            _update(jnp.where(col < rem, logits, -jnp.inf))

    @pl.when(j == nj - 1)
    def _():
        lse_ref[...] = jnp.log(l_ref[...]) + m_ref[...]


def _pick_class_tile(c, tc_max):
    """Full C if it fits; else prefer a multiple-of-128 divisor of C (no mask)."""
    if c <= tc_max:
        return c
    t = tc_max - tc_max % 128
    while t >= 128:
        if c % t == 0:
            return t
        t -= 128
    return max(tc_max - tc_max % 128, 128)   # masked-last-tile fallback


def _pick_row_tile(n, tm_max):
    if n > tm_max:
        return tm_max
    # Megacore (v7x): when N fits one tile but is large enough, split rows so
    # the "parallel" axis has >= 2 tiles and both TensorCores share the work.
    if n >= 256:
        return -(-((n + 1) // 2) // 8) * 8   # round_up(ceil(n/2), 8)
    return n


def loss_avqa(pred: jax.Array, target: jax.Array, *,
              tm_max: int = 1024, tc_max: int | None = None) -> jax.Array:
    """JAX/Pallas equivalent of LossAVQA()(pred, target) (mean cross-entropy)."""
    n, c = pred.shape
    itemsize = jnp.dtype(pred.dtype).itemsize
    if tc_max is None:
        # dtype-dependent: keep logits blocks ~8 MiB regardless of element size
        tc_max = 2048 if itemsize >= 4 else 4096

    tm = _pick_row_tile(n, tm_max)
    tc = _pick_class_tile(c, tc_max)
    ni = pl.cdiv(n, tm)
    nj = pl.cdiv(c, tc)

    cost = pl.CostEstimate(
        flops=4 * n * c,
        transcendentals=n * c,
        bytes_accessed=n * c * itemsize + n * 4,
    )

    lse = pl.pallas_call(
        functools.partial(_lse_kernel, num_cols=c),
        out_shape=jax.ShapeDtypeStruct((n, 1), jnp.float32),
        grid=(ni, nj),
        in_specs=[
            pl.BlockSpec((tm, tc), lambda i, j: (i, j)),   # logits, native dtype
        ],
        out_specs=pl.BlockSpec((tm, 1), lambda i, j: (i, 0)),
        scratch_shapes=[
            pltpu.VMEM((tm, 1), jnp.float32),  # running max
            pltpu.VMEM((tm, 1), jnp.float32),  # running sum-exp
        ],
        compiler_params=pltpu.CompilerParams(
            dimension_semantics=("parallel", "arbitrary"),
            vmem_limit_bytes=48 * 1024 * 1024,
        ),
        cost_estimate=cost,
    )(pred)

    # Target-logit pick: tiny XLA gather (N elements), kept out of the kernel.
    tgt = target.astype(jnp.int32).reshape(n, 1)
    picked = jnp.take_along_axis(pred, tgt, axis=-1).astype(jnp.float32)

    # per-row NLL = logsumexp - picked; mean over the TRUE batch size.
    return jnp.mean(lse - picked)


if __name__ == "__main__":
    key = jax.random.PRNGKey(0)
    k_pred, k_tgt, k_pred2, k_tgt2 = jax.random.split(key, 4)

    # --- Case 1: ragged class dim (masked last class tile) + ragged row tiles.
    N, C = 20, 300
    pred = jax.random.normal(k_pred, (N, C), dtype=jnp.float32)
    target = jax.random.randint(k_tgt, (N,), 0, C, dtype=jnp.int32)

    log_probs = jax.nn.log_softmax(pred.astype(jnp.float32), axis=-1)
    ref = -jnp.mean(log_probs[jnp.arange(N), target])

    loss_tiled = loss_avqa(pred, target, tm_max=8, tc_max=128)   # (3, 3) grid
    jax.block_until_ready(loss_tiled)
    assert jnp.allclose(loss_tiled, ref, rtol=1e-5, atol=1e-5), (loss_tiled, ref)

    loss_single = loss_avqa(pred, target)                        # single block
    jax.block_until_ready(loss_single)
    assert jnp.allclose(loss_single, ref, rtol=1e-5, atol=1e-5), (loss_single, ref)

    # --- Case 2: tile-aligned class dim (divisor class tile, no masking path).
    N2, C2 = 20, 256
    pred2 = jax.random.normal(k_pred2, (N2, C2), dtype=jnp.float32)
    target2 = jax.random.randint(k_tgt2, (N2,), 0, C2, dtype=jnp.int32)

    log_probs2 = jax.nn.log_softmax(pred2.astype(jnp.float32), axis=-1)
    ref2 = -jnp.mean(log_probs2[jnp.arange(N2), target2])

    loss2 = loss_avqa(pred2, target2, tm_max=8, tc_max=128)      # (3, 2) grid
    jax.block_until_ready(loss2)
    assert jnp.allclose(loss2, ref2, rtol=1e-5, atol=1e-5), (loss2, ref2)

    print("KERNEL_OK")
</pallas_src>

<mosaic_0001>
module attributes {stable_mosaic.version = 11 : i64} {
  func.func @_lse_kernel(%arg0: i32, %arg1: i32, %arg2: memref<8x128xf32, #tpu.memory_space<vmem>>, %arg3: memref<8x1xf32, #tpu.memory_space<vmem>>, %arg4: memref<8x1xf32, #tpu.memory_space<vmem>>, %arg5: memref<8x1xf32, #tpu.memory_space<vmem>>) attributes {dimension_semantics = [#tpu.dimension_semantics<parallel>, #tpu.dimension_semantics<arbitrary>], iteration_bounds = array<i64: 3, 3>, scalar_prefetch = 0 : i64, scratch_operands = 2 : i64, tpu.core_type = #tpu.core_type<tc>, window_params = [{transform_indices = @transform_0, window_bounds = array<i64: 8, 128>}, {transform_indices = @transform_1, window_bounds = array<i64: 8, 1>}]} {
    %c0_i32 = arith.constant 0 : i32
    %0 = arith.cmpi eq, %arg1, %c0_i32 : i32
    %1 = arith.extui %0 : i1 to i32
    %c0_i32_0 = arith.constant 0 : i32
    %2 = arith.cmpi ne, %1, %c0_i32_0 : i32
    scf.if %2 {
      %cst = arith.constant 0xFF800000 : f32
      %13 = vector.broadcast %cst : f32 to vector<8x1xf32>
      %c0_7 = arith.constant 0 : index
      %c0_8 = arith.constant 0 : index
      %14 = vector.load %arg4[%c0_7, %c0_8] : memref<8x1xf32, #tpu.memory_space<vmem>>, vector<8x1xf32>
      tpu.vector_store %arg4[%c0_7, %c0_8], %13 {strides = array<i32>} : memref<8x1xf32, #tpu.memory_space<vmem>>, vector<8x1xf32>,
      %cst_9 = arith.constant 0.000000e+00 : f32
      %15 = vector.broadcast %cst_9 : f32 to vector<8x1xf32>
      %c0_10 = arith.constant 0 : index
      %c0_11 = arith.constant 0 : index
      %16 = vector.load %arg5[%c0_10, %c0_11] : memref<8x1xf32, #tpu.memory_space<vmem>>, vector<8x1xf32>
      tpu.vector_store %arg5[%c0_10, %c0_11], %15 {strides = array<i32>} : memref<8x1xf32, #tpu.memory_space<vmem>>, vector<8x1xf32>,
    } else {
    }
    %c0 = arith.constant 0 : index
    %c0_1 = arith.constant 0 : index
    %3 = vector.load %arg2[%c0, %c0_1] : memref<8x128xf32, #tpu.memory_space<vmem>>, vector<8x128xf32>
    %c2_i32 = arith.constant 2 : i32
    %4 = arith.cmpi slt, %arg1, %c2_i32 : i32
    %5 = arith.extui %4 : i1 to i32
    %c0_i32_2 = arith.constant 0 : i32
    %6 = arith.cmpi ne, %5, %c0_i32_2 : i32
    scf.if %6 {
      %c0_7 = arith.constant 0 : index
      %c0_8 = arith.constant 0 : index
      %13 = vector.load %arg4[%c0_7, %c0_8] : memref<8x1xf32, #tpu.memory_space<vmem>>, vector<8x1xf32>
      %cst = arith.constant dense<0xFF800000> : vector<8xf32>
      %14 = vector.multi_reduction <maximumf>, %3, %cst [1] : vector<8x128xf32> to vector<8xf32>
      %15 = vector.shape_cast %14 : vector<8xf32> to vector<8x1xf32>
      %16 = arith.maximumf %13, %15 : vector<8x1xf32>
      %17 = arith.subf %13, %16 : vector<8x1xf32>
      %18 = math.exp %17 : vector<8x1xf32>
      %c0_9 = arith.constant 0 : index
      %c0_10 = arith.constant 0 : index
      %19 = vector.load %arg5[%c0_9, %c0_10] : memref<8x1xf32, #tpu.memory_space<vmem>>, vector<8x1xf32>
      %20 = arith.mulf %18, %19 : vector<8x1xf32>
      %21 = vector.broadcast %16 : vector<8x1xf32> to vector<8x128xf32>
      %22 = arith.subf %3, %21 : vector<8x128xf32>
      %23 = math.exp %22 : vector<8x128xf32>
      %cst_11 = arith.constant dense<0.000000e+00> : vector<8xf32>
      %24 = vector.multi_reduction <add>, %23, %cst_11 [1] : vector<8x128xf32> to vector<8xf32>
      %25 = vector.shape_cast %24 : vector<8xf32> to vector<8x1xf32>
      %26 = arith.addf %20, %25 : vector<8x1xf32>
      %c0_12 = arith.constant 0 : index
      %c0_13 = arith.constant 0 : index
      %27 = vector.load %arg5[%c0_12, %c0_13] : memref<8x1xf32, #tpu.memory_space<vmem>>, vector<8x1xf32>
      tpu.vector_store %arg5[%c0_12, %c0_13], %26 {strides = array<i32>} : memref<8x1xf32, #tpu.memory_space<vmem>>, vector<8x1xf32>,
      %c0_14 = arith.constant 0 : index
      %c0_15 = arith.constant 0 : index
      %28 = vector.load %arg4[%c0_14, %c0_15] : memref<8x1xf32, #tpu.memory_space<vmem>>, vector<8x1xf32>
      tpu.vector_store %arg4[%c0_14, %c0_15], %16 {strides = array<i32>} : memref<8x1xf32, #tpu.memory_space<vmem>>, vector<8x1xf32>,
    } else {
    }
    %c2_i32_3 = arith.constant 2 : i32
    %7 = arith.cmpi eq, %arg1, %c2_i32_3 : i32
    %8 = arith.extui %7 : i1 to i32
    %c0_i32_4 = arith.constant 0 : i32
    %9 = arith.cmpi ne, %8, %c0_i32_4 : i32
    scf.if %9 {
      %c128_i32 = arith.constant 128 : i32
      %13 = arith.muli %arg1, %c128_i32 : i32
      %c300_i32 = arith.constant 300 : i32
      %14 = arith.subi %c300_i32, %13 : i32
      %15 = tpu.iota {dimensions = array<i32: 1>} : vector<8x128xi32>
      %16 = vector.broadcast %14 : i32 to vector<8x128xi32>
      %17 = arith.cmpi slt, %15, %16 : vector<8x128xi32>
      %cst = arith.constant 0xFF800000 : f32
      %18 = vector.broadcast %cst : f32 to vector<8x128xf32>
      %19 = arith.select %17, %3, %18 : vector<8x128xi1>, vector<8x128xf32>
      %c0_7 = arith.constant 0 : index
      %c0_8 = arith.constant 0 : index
      %20 = vector.load %arg4[%c0_7, %c0_8] : memref<8x1xf32, #tpu.memory_space<vmem>>, vector<8x1xf32>
      %cst_9 = arith.constant dense<0xFF800000> : vector<8xf32>
      %21 = vector.multi_reduction <maximumf>, %19, %cst_9 [1] : vector<8x128xf32> to vector<8xf32>
      %22 = vector.shape_cast %21 : vector<8xf32> to vector<8x1xf32>
      %23 = arith.maximumf %20, %22 : vector<8x1xf32>
      %24 = arith.subf %20, %23 : vector<8x1xf32>
      %25 = math.exp %24 : vector<8x1xf32>
      %c0_10 = arith.constant 0 : index
      %c0_11 = arith.constant 0 : index
      %26 = vector.load %arg5[%c0_10, %c0_11] : memref<8x1xf32, #tpu.memory_space<vmem>>, vector<8x1xf32>
      %27 = arith.mulf %25, %26 : vector<8x1xf32>
      %28 = vector.broadcast %23 : vector<8x1xf32> to vector<8x128xf32>
      %29 = arith.subf %19, %28 : vector<8x128xf32>
      %30 = math.exp %29 : vector<8x128xf32>
      %cst_12 = arith.constant dense<0.000000e+00> : vector<8xf32>
      %31 = vector.multi_reduction <add>, %30, %cst_12 [1] : vector<8x128xf32> to vector<8xf32>
      %32 = vector.shape_cast %31 : vector<8xf32> to vector<8x1xf32>
      %33 = arith.addf %27, %32 : vector<8x1xf32>
      %c0_13 = arith.constant 0 : index
      %c0_14 = arith.constant 0 : index
      %34 = vector.load %arg5[%c0_13, %c0_14] : memref<8x1xf32, #tpu.memory_space<vmem>>, vector<8x1xf32>
      tpu.vector_store %arg5[%c0_13, %c0_14], %33 {strides = array<i32>} : memref<8x1xf32, #tpu.memory_space<vmem>>, vector<8x1xf32>,
      %c0_15 = arith.constant 0 : index
      %c0_16 = arith.constant 0 : index
      %35 = vector.load %arg4[%c0_15, %c0_16] : memref<8x1xf32, #tpu.memory_space<vmem>>, vector<8x1xf32>
      tpu.vector_store %arg4[%c0_15, %c0_16], %23 {strides = array<i32>} : memref<8x1xf32, #tpu.memory_space<vmem>>, vector<8x1xf32>,
    } else {
    }
    %c2_i32_5 = arith.constant 2 : i32
    %10 = arith.cmpi eq, %arg1, %c2_i32_5 : i32
    %11 = arith.extui %10 : i1 to i32
    %c0_i32_6 = arith.constant 0 : i32
    %12 = arith.cmpi ne, %11, %c0_i32_6 : i32
    scf.if %12 {
      %c0_7 = arith.constant 0 : index
      %c0_8 = arith.constant 0 : index
      %13 = vector.load %arg5[%c0_7, %c0_8] : memref<8x1xf32, #tpu.memory_space<vmem>>, vector<8x1xf32>
      %14 = math.log %13 : vector<8x1xf32>
      %c0_9 = arith.constant 0 : index
      %c0_10 = arith.constant 0 : index
      %15 = vector.load %arg4[%c0_9, %c0_10] : memref<8x1xf32, #tpu.memory_space<vmem>>, vector<8x1xf32>
      %16 = arith.addf %14, %15 : vector<8x1xf32>
      %c0_11 = arith.constant 0 : index
      %c0_12 = arith.constant 0 : index
      %17 = vector.load %arg3[%c0_11, %c0_12] : memref<8x1xf32, #tpu.memory_space<vmem>>, vector<8x1xf32>
      tpu.vector_store %arg3[%c0_11, %c0_12], %16 {strides = array<i32>} : memref<8x1xf32, #tpu.memory_space<vmem>>, vector<8x1xf32>,
    } else {
    }
    return
  }
  func.func @transform_0(%arg0: i32, %arg1: i32) -> (i32, i32) {
    %c0_i32 = arith.constant 0 : i32
    return %arg0, %arg1 : i32, i32
  }
  func.func @transform_1(%arg0: i32, %arg1: i32) -> (i32, i32) {
    %c0_i32 = arith.constant 0 : i32
    %c0_i32_0 = arith.constant 0 : i32
    return %arg0, %c0_i32 : i32, i32
  }
}

</mosaic_0001>

<llo_original>
// kernel: tpu_custom_call.1
$region0: #{tpu_custom_call.1}
  #allocation0 [shape = 'u32[]', space=smem, size = 0x4, offset = 0x4, fixed_abs, tag = 'smem constant byte address 0x4 - core index']
  #allocation1 [shape = 'u32[144,128]{1,0:T(1,128)}', space=vmem, size = 0x12000, scoped, tag = 'internal scratch']
  #allocation2 [shape = 'f32[8,1]{1,0:T(8,128)}', space=vmem, size = 0x1000, scoped, tag = 'scratch operand']
  #allocation3 [shape = 'f32[8,1]{1,0:T(8,128)}', space=vmem, size = 0x1000, scoped, tag = 'scratch operand']
  %s0 = inlined_call_operand.hbm [shape: f32[20,300], index: 0, kind: input, shape index: {}]
  %s1 = inlined_call_operand.vmem [shape: f32[20,1], index: 1, kind: output, shape index: {}]
  %s2 = sld [smem:[#allocation0]]
  $region53: #{tpu_custom_call.1} parent=0
    _
  %s4 = ssub.s32 1, %s2
  %s5 = scalar_select 0, %s4, %s2
  $region1: #{tpu_custom_call.1} parent=0
    #allocation4 [shape = 'u8[8192]{0}', space=vmem, size = 0x2000, scoped, tag = 'input window, operand 0']
    #allocation5 [shape = 's32[2]{0}', space=sflag, size = 0x8, scoped, tag = 'scoped memory for tpu_custom_call.1']
    %6 = vsyncpa [#allocation5], 0
    %s7 = scalar_lea.sflag [#allocation5], 1
    %8 = vsyncpa %s7, 0
    loop: start=0, step=1, limit=11
    $region2: #{tpu_custom_call.1} parent=1 // loop_pre_header
      _
    $region3: #{tpu_custom_call.1} parent=1 // loop_header
      %s10 = sphi 0, %s14
      %p11 = scmp.ge.s32.totalorder %s10, 11
      %s17 = sphi 0, %s29
      %s18 = sphi 0, %s25
      %s19 = sphi 0, %s17
      %s20 = sphi 0, %s18
      %s21 = sphi 0, %s19
      %s22 = sphi 0, %s20
      %s34 = sphi 0, %s36
      %s37 = sphi 0, %s34
      %s38 = sphi 0, %s37
      %s54 = sphi 0, %s38
      %s60 = sphi 0, %s62
      %s63 = sphi 0, %s60
      %s64 = sphi 0, %s63
      %s80 = sphi 0, %s64
    $region4: #{tpu_custom_call.1} parent=1 // loop_header_branch
      %13 = sbr.rel (%p11) target = $region8
    $region5: #{tpu_custom_call.1} parent=1 // loop_body
      %s15 = ssub.s32 %s10, 1
      %s16 = ssub.s32 %s10, 2
      %s23 = sadd.s32 1, %s18
      %p24 = scmp.ge.s32.totalorder %s23, 3
      %s25 = scalar_select %p24, 0, %s23
      %s26 = sadd.s32 1, %s17
      %s27 = scalar_select %p24, %s26, %s17
      %p28 = scmp.ge.s32.totalorder %s27, 3
      %s29 = scalar_select %p28, 0, %s27
      %s30 = ssub.s32 %s17, %s29
      %s31 = ssub.s32 %s18, %s25
      %s32 = sor.u32 %s30, %s31
      %p33 = scmp.eq.s32.totalorder %s32, 0
      %s35 = sadd.s32 %s34, 1
      %s36 = scalar_select %p33, %s34, %s35
      %p39 = pneg %p33
      %p40 = scmp.eq.s32.totalorder %s10, 8
      %p41 = por %p39, %p40
      %p42 = scmp.ne.s32.totalorder %s34, %s37
      %p43 = scmp.eq.s32.totalorder %s10, 0
      %p44 = por %p42, %p43
      %p45 = scmp.ne.s32.totalorder %s34, %s37
      %p46 = scmp.eq.s32.totalorder %s15, 8
      %p47 = por %p45, %p46
      %p48 = scmp.ne.s32.totalorder %s37, %s38
      %p49 = scmp.eq.s32.totalorder %s15, 0
      %p50 = por %p48, %p49
      %p51 = scmp.ne.s32.totalorder %s37, %s38
      %p52 = scmp.eq.s32.totalorder %s16, 8
      %p53 = por %p51, %p52
      %p55 = scmp.ne.s32.totalorder %s38, %s54
      %p56 = scmp.eq.s32.totalorder %s16, 0
      %p57 = por %p55, %p56
      %s58 = ssub.s32 %s17, %s29
      %p59 = scmp.eq.s32.totalorder %s58, 0
      %s61 = sadd.s32 %s60, 1
      %s62 = scalar_select %p59, %s60, %s61
      %p65 = pneg %p59
      %p66 = scmp.eq.s32.totalorder %s10, 8
      %p67 = por %p65, %p66
      %p68 = scmp.ne.s32.totalorder %s60, %s63
      %p69 = scmp.eq.s32.totalorder %s10, 0
      %p70 = por %p68, %p69
      %p71 = scmp.ne.s32.totalorder %s60, %s63
      %p72 = scmp.eq.s32.totalorder %s15, 8
      %p73 = por %p71, %p72
      %p74 = scmp.ne.s32.totalorder %s63, %s64
      %p75 = scmp.eq.s32.totalorder %s15, 0
      %p76 = por %p74, %p75
      %p77 = scmp.ne.s32.totalorder %s63, %s64
      %p78 = scmp.eq.s32.totalorder %s16, 8
      %p79 = por %p77, %p78
      %p81 = scmp.ne.s32.totalorder %s64, %s80
      %p82 = scmp.eq.s32.totalorder %s16, 0
      %p83 = por %p81, %p82
      %p84 = scmp.le.s32.totalorder 1, %s10
      %p85 = scmp.lt.s32.totalorder %s10, 10
      %p86 = pnand %p84, %p85
      %p87 = pneg %p86
      // Predicated region
      $region9: #{tpu_custom_call.1} parent=5 // pred_check
        _
      $region10: #{tpu_custom_call.1} parent=5 // pred_check_branch
        %89 = sbr.rel (%p86) target = $region12
      $region11: #{tpu_custom_call.1} parent=5 // pred_region
        %s90 = ssub.s32 %s10, 1
      $region12: #{tpu_custom_call.1} parent=5 // pred_fallthru
        _
      %p91 = scmp.lt.s32.totalorder %s10, 9
      // Predicated region
      $region13: #{tpu_custom_call.1} parent=5 // pred_check
        %p92 = pneg %p91
      $region14: #{tpu_custom_call.1} parent=5 // pred_check_branch
        %94 = sbr.rel (%p92) target = $region16
      $region15: #{tpu_custom_call.1} parent=5 // pred_region
        // Predicated region
        $region17: #{tpu_custom_call.1} parent=15 // pred_check
          %p95 = pneg %p44
        $region18: #{tpu_custom_call.1} parent=15 // pred_check_branch
          %97 = sbr.rel (%p95) target = $region20
        $region19: #{tpu_custom_call.1} parent=15 // pred_region
          %s98 = sand.u32 %s34, 1
          %s99 = scalar_lea.sflag [#allocation5], %s98
          %s100 = sand.u32 %s34, 1
          %s101 = smul.addr %s100, 8
          %s102 = scalar_lea.vmem [#allocation4], %s101
          %s104 = ssub.s32 128, 128
          %105 = vsyncadd %s99, %s104
          %s106 = smul.addr %s17, 3
          %s107 = sadd.s32 %s18, %s106
          %s108 = smul.addr %s107, 128
          %s109 = scalar_lea.hbm %s0, %s108
          %s111 = sshll.u32 %s102, 4
          %s112 = int_to_ptr.vmem [resolvable:$true] %s111
          %114 = dma.hbm_to_vmem [thread:$0]  %s109, 128, %s112, %s99
        $region20: #{tpu_custom_call.1} parent=15 // pred_fallthru
          _
      $region16: #{tpu_custom_call.1} parent=5 // pred_fallthru
        _
      %p115 = scmp.le.s32.totalorder 1, %s10
      %p116 = scmp.lt.s32.totalorder %s10, 10
      %p117 = pnand %p115, %p116
      %p118 = pneg %p117
      // Predicated region
      $region21: #{tpu_custom_call.1} parent=5 // pred_check
        _
      $region22: #{tpu_custom_call.1} parent=5 // pred_check_branch
        %120 = sbr.rel (%p117) target = $region24
      $region23: #{tpu_custom_call.1} parent=5 // pred_region
        %s121 = ssub.s32 %s10, 1
        %s122 = sand.u32 %s37, 1
        %s123 = scalar_lea.sflag [#allocation5], %s122
        %s124 = sand.u32 %s37, 1
        %s125 = smul.addr %s124, 8
        %s126 = scalar_lea.vmem [#allocation4], %s125
        // Predicated region
        $region25: #{tpu_custom_call.1} parent=23 // pred_check
          %p127 = pneg %p50
        $region26: #{tpu_custom_call.1} parent=23 // pred_check_branch
          %129 = sbr.rel (%p127) target = $region28
        $region27: #{tpu_custom_call.1} parent=23 // pred_region
          %130 = dma.done %s123, 128
        $region28: #{tpu_custom_call.1} parent=23 // pred_fallthru
          _
        %s131 = sand.u32 %s37, 1
        %s132 = scalar_lea.sflag [#allocation5], %s131
        %s133 = sand.u32 %s37, 1
        %s134 = smul.addr %s133, 8
        %s135 = scalar_lea.vmem [#allocation4], %s134
        %p136 = pneg %p50
        %p137 = pneg %p47
        %p138 = pneg %p76
        %p139 = pneg %p73
        %p140 = scmp.lt.s32.totalorder %s19, 2
        %s141 = scalar_select %p140, %s19, 2
        %s142 = smul.addr %s141, 8
        %s143 = scalar_lea.vmem %s1, %s142
        %p144 = scmp.lt.s32.totalorder %s19, 2
        %s145 = scalar_select %p144, %s19, 2
        %s146 = smul.addr %s145, 8
        %s147 = scalar_lea.vmem %s1, %s146
        %p148 = scmp.eq.s32.totalorder %s20, 0
        // Predicated region
        $region29: #{tpu_custom_call.1} parent=23 // pred_check
          %p149 = pneg %p148
        $region30: #{tpu_custom_call.1} parent=23 // pred_check_branch
          %151 = sbr.rel (%p149) target = $region32
        $region31: #{tpu_custom_call.1} parent=23 // pred_region
          %vm152 = vcmask 7168
          %153 = vst.msk [vmem:[#allocation2] sm:$0xff] %vm152, -inf
          %154 = vst.msk [vmem:[#allocation3] sm:$0xff] %vm152, 0.0
        $region32: #{tpu_custom_call.1} parent=23 // pred_fallthru
          _
        %v155 = vld [vmem:[%s126] sm:$0xff]
        %p156 = scmp.lt.s32.totalorder %s20, 2
        // Predicated region
        $region33: #{tpu_custom_call.1} parent=23 // pred_check
          %p157 = pneg %p156
        $region34: #{tpu_custom_call.1} parent=23 // pred_check_branch
          %159 = sbr.rel (%p157) target = $region36
        $region35: #{tpu_custom_call.1} parent=23 // pred_region
          %v160 = vld [vmem:[#allocation2] sm:$0xff]
          %161 = vmax.xlane.f32.xlu0 %v155
          %v162 = vpop.xlane.xlu0 %161
          %v163 = vmax.f32 %v160, %v162
          %v164 = vsub.f32 %v160, %v163
          %v165 = vmul.f32 %v164, 1.442695
          %v166 = vpow.pop %v165
          %v167 = vld [vmem:[#allocation3] sm:$0xff]
          %v168 = vmul.f32 %v166, %v167
          %170 = vset.pattern.permute.xlu0 0
          %171 = vperm.xlu0 %170, %v163
          %v172 = vpop.permute.xlu0 %171
          %v174 = vsub.f32 %v155, %v172
          %v175 = vmul.f32 %v174, 1.442695
          %v176 = vpow.pop %v175
          %177 = vadd.xlane.f32.xlu0 %v176
          %v178 = vpop.xlane.xlu0 %177
          %v179 = vadd.f32 %v168, %v178
          %vm180 = vcmask 7168
          %181 = vst.msk [vmem:[#allocation3] sm:$0xff] %vm180, %v179
          %182 = vst.msk [vmem:[#allocation2] sm:$0xff] %vm180, %v163
        $region36: #{tpu_custom_call.1} parent=23 // pred_fallthru
          _
        %p183 = scmp.eq.s32.totalorder %s20, 2
        // Predicated region
        $region37: #{tpu_custom_call.1} parent=23 // pred_check
          %p184 = pneg %p183
        $region38: #{tpu_custom_call.1} parent=23 // pred_check_branch
          %186 = sbr.rel (%p184) target = $region40
        $region39: #{tpu_custom_call.1} parent=23 // pred_region
          %s187 = smul.u32 %s20, 128
          %s188 = ssub.s32 300, %s187
          %v189 = vlaneseq
          %v190 = vand.u32 %v189, 127
          %v191 = vstv %s188
          %vm192 = vcmp.lt.s32.totalorder %v190, %v191
          %v193 = vsel %vm192, %v155, -inf
          %v194 = vld [vmem:[#allocation2] sm:$0xff]
          %195 = vmax.xlane.f32.xlu0 %v193
          %v196 = vpop.xlane.xlu0 %195
          %v197 = vmax.f32 %v194, %v196
          %v198 = vsub.f32 %v194, %v197
          %v199 = vmul.f32 %v198, 1.442695
          %v200 = vpow.pop %v199
          %v201 = vld [vmem:[#allocation3] sm:$0xff]
          %v202 = vmul.f32 %v200, %v201
          %204 = vset.pattern.permute.xlu0 0
          %205 = vperm.xlu0 %204, %v197
          %v206 = vpop.permute.xlu0 %205
          %v208 = vsub.f32 %v193, %v206
          %v209 = vmul.f32 %v208, 1.442695
          %v210 = vpow.pop %v209
          %211 = vadd.xlane.f32.xlu0 %v210
          %v212 = vpop.xlane.xlu0 %211
          %v213 = vadd.f32 %v202, %v212
          %vm214 = vcmask 7168
          %215 = vst.msk [vmem:[#allocation3] sm:$0xff] %vm214, %v213
          %216 = vst.msk [vmem:[#allocation2] sm:$0xff] %vm214, %v197
          %v217 = vld [vmem:[#allocation3] sm:$0xff]
          %v218 = vlog2.pop %v217
          %v219 = vmul.f32 %v218, 0.6931472
          %v220 = vld [vmem:[#allocation2] sm:$0xff]
          %v221 = vadd.f32 %v219, %v220
          %222 = vst.msk [vmem:[%s147] sm:$0xff] %vm214, %v221
        $region40: #{tpu_custom_call.1} parent=23 // pred_fallthru
          _
        %p223 = scmp.lt.s32.totalorder %s19, 2
        %s224 = scalar_select %p223, %s19, 2
        %s225 = smul.addr %s224, 8
        %s226 = scalar_lea.vmem %s1, %s225
        // Predicated region
        $region41: #{tpu_custom_call.1} parent=23 // pred_check
          %p227 = pneg %p73
        $region42: #{tpu_custom_call.1} parent=23 // pred_check_branch
          %229 = sbr.rel (%p227) target = $region44
        $region43: #{tpu_custom_call.1} parent=23 // pred_region
          _
        $region44: #{tpu_custom_call.1} parent=23 // pred_fallthru
          _
      $region24: #{tpu_custom_call.1} parent=5 // pred_fallthru
        _
      %p230 = scmp.le.s32.totalorder 2, %s10
      // Predicated region
      $region45: #{tpu_custom_call.1} parent=5 // pred_check
        %p231 = pneg %p230
      $region46: #{tpu_custom_call.1} parent=5 // pred_check_branch
        %233 = sbr.rel (%p231) target = $region48
      $region47: #{tpu_custom_call.1} parent=5 // pred_region
        %s234 = ssub.s32 %s10, 2
        // Predicated region
        $region49: #{tpu_custom_call.1} parent=47 // pred_check
          %p235 = pneg %p79
        $region50: #{tpu_custom_call.1} parent=47 // pred_check_branch
          %237 = sbr.rel (%p235) target = $region52
        $region51: #{tpu_custom_call.1} parent=47 // pred_region
          %p238 = scmp.lt.s32.totalorder %s21, 2
          %s239 = scalar_select %p238, %s21, 2
          %s240 = smul.addr %s239, 8
          %s241 = scalar_lea.vmem %s1, %s240
        $region52: #{tpu_custom_call.1} parent=47 // pred_fallthru
          _
      $region48: #{tpu_custom_call.1} parent=5 // pred_fallthru
        _
    $region6: #{tpu_custom_call.1} parent=1 // loop_footer
      %s14 = sadd.s32 1, %s10
    $region7: #{tpu_custom_call.1} parent=1 // loop_footer_branch
      %9 = sbr.rel target = $region3
    $region8: #{tpu_custom_call.1} parent=1 // loop_exit
      _
    %242 = vsyncpa [#allocation5], 1
    %s243 = scalar_lea.sflag [#allocation5], 1
    %244 = vsyncpa %s243, 1

</llo_original>
